<compile_context>
chip_gen: v7x
topology: tpu7x:2x2x1
jax: 0.10.0
libtpu: 0.0.40
codegen_flags: <defaults>
</compile_context>

<pallas_src>
import functools

import jax
import jax.numpy as jnp
from jax.experimental import pallas as pl
from jax.experimental.pallas import tpu as pltpu


def _grid_sample_kernel(grid_ref, tex_ref, out_ref, *, H, W):
    """Bilinear grid_sample (padding_mode='zeros', align_corners=False), transposed.

    grid_ref: [2, TP]  f32, PyTorch normalized coords (row 0 = x/width, row 1 = y/height)
    tex_ref : [8, HW]  f32, channels on sublanes (zero padded 3->8), pixels on lanes
    out_ref : [8, TP]  f32, channels on sublanes, samples on lanes
    """
    TP = grid_ref.shape[1]

    gx = grid_ref[0:1, :]  # [1, TP]
    gy = grid_ref[1:2, :]  # [1, TP]

    # Un-normalize (align_corners=False):  ix = ((x + 1) * W - 1) / 2
    ix = ((gx + 1.0) * float(W) - 1.0) * 0.5
    iy = ((gy + 1.0) * float(H) - 1.0) * 0.5

    x0f = jnp.floor(ix)
    y0f = jnp.floor(iy)
    x0 = x0f.astype(jnp.int32)   # [1, TP]  int32 index math (exact for any size)
    y0 = y0f.astype(jnp.int32)

    wx1 = ix - x0f
    wx0 = 1.0 - wx1
    wy1 = iy - y0f
    wy0 = 1.0 - wy1

    if W % 8 == 0:
        # ---- Separable construction (fast path) -----------------------------
        # Row / column one-hots built with small compares; out-of-range corner
        # indices never match the iota, which implements zeros-padding with no
        # explicit valid mask or clipping (y0 and y0+1 cannot collide).
        x0_3, y0_3 = x0[:, None, :], y0[:, None, :]          # [1, 1, TP]
        wx0_3, wx1_3 = wx0[:, None, :], wx1[:, None, :]
        wy0_3, wy1_3 = wy0[:, None, :], wy1[:, None, :]

        iota_y = jax.lax.broadcasted_iota(jnp.int32, (H, 1, TP), 0)
        iota_x = jax.lax.broadcasted_iota(jnp.int32, (1, W, TP), 1)

        rowhot = (jnp.where(iota_y == y0_3, wy0_3, 0.0)
                  + jnp.where(iota_y == y0_3 + 1, wy1_3, 0.0))   # [H, 1, TP]
        colhot = (jnp.where(iota_x == x0_3, wx0_3, 0.0)
                  + jnp.where(iota_x == x0_3 + 1, wx1_3, 0.0))   # [1, W, TP]

        # One full-size [H, W, TP] multiply pass; the (H, W) -> HW merge is
        # layout-preserving because W % 8 == 0.
        wmat = (rowhot * colhot).reshape(H * W, TP)              # [HW, TP]
    else:
        # ---- Fallback: single-pass where()-based 4-corner one-hot -----------
        HW = tex_ref.shape[1]
        iota_hw = jax.lax.broadcasted_iota(jnp.int32, (HW, 1), 0)
        wmat = None
        corners = ((0, 0, wx0, wy0), (1, 0, wx1, wy0),
                   (0, 1, wx0, wy1), (1, 1, wx1, wy1))
        for dx, dy, wx, wy in corners:
            xc = x0 + dx
            yc = y0 + dy
            hit = ((iota_hw == yc * W + xc)
                   & (xc >= 0) & (xc < W) & (yc >= 0) & (yc < H))   # [HW, TP]
            wsel = jnp.where(hit, wx * wy, 0.0)
            wmat = wsel if wmat is None else wmat + wsel

    # Single MXU matmul: [8, HW] @ [HW, TP] -> [8, TP]  (MXU has plenty of slack).
    out_ref[...] = jnp.dot(tex_ref[...], wmat, preferred_element_type=jnp.float32)


def pallas_grid_sample(texture_image, texture_grid, tile_p=512):
    """texture_image: [1, C, H, W] f32; texture_grid: [1, nfaces, K, 2] f32.

    Returns the equivalent of
      F.grid_sample(texture_image, texture_grid).permute(0, 2, 3, 1)  -> [1, nfaces, K, C]
    """
    _, C, H, W = texture_image.shape
    _, nfaces, K, _ = texture_grid.shape
    P = nfaces * K
    HW = H * W
    CS = 8  # channels padded onto sublanes (3 -> 8)

    # --- Tile-size selection (perf review) ----------------------------------
    # Large lane-dense tiles amortize the ~0.35us per-grid-step overhead, but the
    # per-tile footprint (outer-product temp + wmat + double-buffered texture +
    # pipelined grid/out tiles) must stay under every generation's default scoped
    # VMEM limit (v5e 16 MiB, v7x 64 MiB total VMEM).  Also prefer >= 2 tiles so
    # the 'parallel' grid axis can shard across v7x's two TensorCores.
    def _round128(x):
        return max(128, (x // 128) * 128)

    TP = _round128(int(tile_p))
    vmem_budget = 12 << 20  # stay under the smallest default scoped limit (v5e)

    def footprint(tp):
        wmat_tmp = 2 * HW * tp * 4            # [H,W,TP] product + [HW,TP] operand
        texture = 2 * CS * HW * 4             # double-buffered resident texture
        streams = 2 * (2 + CS) * tp * 4       # pipelined grid + out tiles
        return wmat_tmp + texture + streams

    while TP > 128 and footprint(TP) > vmem_budget:
        TP = _round128(TP // 2)
    while TP > 128 and pl.cdiv(P, TP) < 2:
        TP = _round128(TP // 2)

    P_pad = pl.cdiv(P, TP) * TP

    # Texture: [8, HW], channels on sublanes, pixels on lanes.
    tex_T = texture_image[0].reshape(C, HW).astype(jnp.float32)
    tex_T = jnp.pad(tex_T, ((0, CS - C), (0, 0)))

    # Sample points: [2, P_pad], lane-dense in P (padded points are zeros: harmless).
    grid_pts = texture_grid.reshape(P, 2).astype(jnp.float32)
    grid_pts = jnp.pad(grid_pts, ((0, P_pad - P), (0, 0)))
    grid_T = jnp.transpose(grid_pts, (1, 0))                     # [2, P_pad]

    out_T = pl.pallas_call(
        functools.partial(_grid_sample_kernel, H=H, W=W),
        out_shape=jax.ShapeDtypeStruct((CS, P_pad), jnp.float32),
        grid=(P_pad // TP,),
        in_specs=[
            pl.BlockSpec((2, TP), lambda i: (0, i)),     # sample-point tile streams
            pl.BlockSpec((CS, HW), lambda i: (0, 0)),    # texture stays resident
        ],
        out_specs=pl.BlockSpec((CS, TP), lambda i: (0, i)),
        compiler_params=pltpu.CompilerParams(
            dimension_semantics=("parallel",)),
    )(grid_T, tex_T)

    # Kernel output stays lane-dense ([8, TP]); the cheap transpose/slice is done
    # wrapper-side.  [8, P_pad] -> [P, C] -> [1, nfaces, K, C]
    return jnp.transpose(out_T[:C, :P], (1, 0)).reshape(1, nfaces, K, C)


def _grid_sample_ref(img, grid):
    """Pure-JAX reference of F.grid_sample(bilinear, zeros, align_corners=False)."""
    _, C, H, W = img.shape
    gx = grid[0, ..., 0]
    gy = grid[0, ..., 1]
    ix = ((gx + 1.0) * W - 1.0) * 0.5
    iy = ((gy + 1.0) * H - 1.0) * 0.5
    x0f = jnp.floor(ix)
    y0f = jnp.floor(iy)
    x0 = x0f.astype(jnp.int32)
    y0 = y0f.astype(jnp.int32)
    wx1 = ix - x0f
    wy1 = iy - y0f
    img0 = img[0]
    out = jnp.zeros(gx.shape + (C,), jnp.float32)
    for dx, dy in ((0, 0), (1, 0), (0, 1), (1, 1)):
        xc = x0 + dx
        yc = y0 + dy
        wx = wx1 if dx == 1 else 1.0 - wx1
        wy = wy1 if dy == 1 else 1.0 - wy1
        valid = (xc >= 0) & (xc < W) & (yc >= 0) & (yc < H)
        w = jnp.where(valid, wx * wy, 0.0)
        xcc = jnp.clip(xc, 0, W - 1)
        ycc = jnp.clip(yc, 0, H - 1)
        vals = jnp.transpose(img0[:, ycc, xcc], (1, 2, 0))  # [Nf, K, C]
        out = out + vals * w[..., None]
    return out[None]


class RendererModelJAX:
    """JAX/Pallas port of RendererModel (stage-2 forward path up to render_rgb)."""

    def __init__(self, mesh_vertices, mesh_faces, mesh_textures, texture_image,
                 texture_size=4, image_size=512, batch_size=1):
        self.texture_size = texture_size
        self.image_size = image_size
        self.batch_size = batch_size

        # Parameters / buffers.
        self.vertices = mesh_vertices                  # nn.Parameter equivalent
        self.original_vertices = jnp.array(mesh_vertices)
        self.faces = mesh_faces
        self.texture_image = texture_image             # nn.Parameter equivalent

        # texture_grid = textures[..., 0:2] / (W/2) - 1; flip y; reshape; unsqueeze(0)
        w_img = texture_image.shape[-1]
        tg = mesh_textures[..., 0:2] / (w_img / 2.0) - 1.0
        tg = tg.at[..., 1].set(0.0 - tg[..., 1])
        tg = tg.reshape(tg.shape[0], -1, tg.shape[-1])[None]   # [1, nfaces, T^3, 2]
        self.texture_grid = tg

        self.elevation = 0
        self.azimuth = 180

    def forward(self, azi=180, ele=0, show_forehead=False, is_stage_2=False):
        self.azimuth = azi
        self.elevation = ele
        if is_stage_2:
            # Hot path: bilinear grid_sample done in the Pallas kernel.
            colors = pallas_grid_sample(self.texture_image, self.texture_grid)
            nfaces = colors.shape[1]
            colors = colors.reshape(
                1, nfaces, self.texture_size, self.texture_size, self.texture_size, 3)
            strangerepeatingtextures = jnp.broadcast_to(
                colors, (self.batch_size,) + colors.shape[1:])
            # TODO(synk): self.renderer.render_rgb(...) + torch.flip(images, [3]) are the
            # neural_renderer CUDA rasterizer; no Pallas equivalent — returning the
            # sampled per-face textures instead.
            return strangerepeatingtextures
        return None


if __name__ == "__main__":
    key = jax.random.PRNGKey(0)
    k1, k2, k3, k4 = jax.random.split(key, 4)

    # Small synthetic mesh / texture consistent with the module's __init__.
    texture_size = 4
    image_size = 64          # renderer image size (unused: render_rgb not implemented)
    batch_size = 2
    nfaces = 8
    nverts = 12
    tex_h = tex_w = 16       # texture_image spatial size
    C = 3

    vertices = jax.random.normal(k1, (nverts, 3), dtype=jnp.float32)
    faces = jax.random.randint(k2, (nfaces, 3), 0, nverts, dtype=jnp.int32)
    # mesh.textures: per-face per-texel pixel coordinates into texture_image, in [0, tex_w)
    textures = jax.random.uniform(
        k3, (nfaces, texture_size, texture_size, texture_size, 3),
        minval=0.0, maxval=float(tex_w), dtype=jnp.float32)
    texture_image = jax.random.uniform(
        k4, (1, C, tex_h, tex_w), dtype=jnp.float32)

    model = RendererModelJAX(vertices, faces, textures, texture_image,
                             texture_size=texture_size,
                             image_size=image_size,
                             batch_size=batch_size)

    out = model.forward(azi=180, ele=0, is_stage_2=True)
    out = jax.block_until_ready(out)
    assert out.shape == (batch_size, nfaces, texture_size, texture_size, texture_size, 3)
    assert jnp.isfinite(out).all()

    # Correctness check against a pure-JAX grid_sample reference.
    ref = _grid_sample_ref(texture_image, model.texture_grid)          # [1, nf, K, 3]
    ref = ref.reshape(1, nfaces, texture_size, texture_size, texture_size, 3)
    ref = jnp.broadcast_to(ref, out.shape)
    assert jnp.allclose(out, ref, atol=1e-5, rtol=1e-5)

    print("KERNEL_OK")
</pallas_src>

<mosaic_0001>
module attributes {stable_mosaic.version = 11 : i64} {
  func.func @_grid_sample_kernel(%arg0: i32, %arg1: memref<2x256xf32, #tpu.memory_space<vmem>>, %arg2: memref<8x256xf32, #tpu.memory_space<vmem>>, %arg3: memref<8x256xf32, #tpu.memory_space<vmem>>) attributes {dimension_semantics = [#tpu.dimension_semantics<parallel>], iteration_bounds = array<i64: 2>, scalar_prefetch = 0 : i64, scratch_operands = 0 : i64, tpu.core_type = #tpu.core_type<tc>, window_params = [{transform_indices = @transform_0, window_bounds = array<i64: 2, 256>}, {pipeline_mode = #tpu.pipeline_mode<synchronous>, transform_indices = @transform_1, window_bounds = array<i64: 8, 256>}, {transform_indices = @transform_2, window_bounds = array<i64: 8, 256>}]} {
    %c0 = arith.constant 0 : index
    %c0_0 = arith.constant 0 : index
    %0 = vector.load %arg1[%c0, %c0_0] : memref<2x256xf32, #tpu.memory_space<vmem>>, vector<1x256xf32>
    %c1 = arith.constant 1 : index
    %c0_1 = arith.constant 0 : index
    %1 = vector.load %arg1[%c1, %c0_1] : memref<2x256xf32, #tpu.memory_space<vmem>>, vector<1x256xf32>
    %cst = arith.constant 1.000000e+00 : f32
    %2 = vector.broadcast %cst : f32 to vector<1x256xf32>
    %3 = arith.addf %0, %2 : vector<1x256xf32>
    %cst_2 = arith.constant 1.600000e+01 : f32
    %4 = vector.broadcast %cst_2 : f32 to vector<1x256xf32>
    %5 = arith.mulf %3, %4 : vector<1x256xf32>
    %cst_3 = arith.constant 1.000000e+00 : f32
    %6 = vector.broadcast %cst_3 : f32 to vector<1x256xf32>
    %7 = arith.subf %5, %6 : vector<1x256xf32>
    %cst_4 = arith.constant 5.000000e-01 : f32
    %8 = vector.broadcast %cst_4 : f32 to vector<1x256xf32>
    %9 = arith.mulf %7, %8 : vector<1x256xf32>
    %cst_5 = arith.constant 1.000000e+00 : f32
    %10 = vector.broadcast %cst_5 : f32 to vector<1x256xf32>
    %11 = arith.addf %1, %10 : vector<1x256xf32>
    %cst_6 = arith.constant 1.600000e+01 : f32
    %12 = vector.broadcast %cst_6 : f32 to vector<1x256xf32>
    %13 = arith.mulf %11, %12 : vector<1x256xf32>
    %cst_7 = arith.constant 1.000000e+00 : f32
    %14 = vector.broadcast %cst_7 : f32 to vector<1x256xf32>
    %15 = arith.subf %13, %14 : vector<1x256xf32>
    %cst_8 = arith.constant 5.000000e-01 : f32
    %16 = vector.broadcast %cst_8 : f32 to vector<1x256xf32>
    %17 = arith.mulf %15, %16 : vector<1x256xf32>
    %18 = math.floor %9 : vector<1x256xf32>
    %19 = math.floor %17 : vector<1x256xf32>
    %20 = arith.fptosi %18 : vector<1x256xf32> to vector<1x256xi32>
    %21 = arith.fptosi %19 : vector<1x256xf32> to vector<1x256xi32>
    %22 = arith.subf %9, %18 : vector<1x256xf32>
    %cst_9 = arith.constant 1.000000e+00 : f32
    %23 = vector.broadcast %cst_9 : f32 to vector<1x256xf32>
    %24 = arith.subf %23, %22 : vector<1x256xf32>
    %25 = arith.subf %17, %19 : vector<1x256xf32>
    %cst_10 = arith.constant 1.000000e+00 : f32
    %26 = vector.broadcast %cst_10 : f32 to vector<1x256xf32>
    %27 = arith.subf %26, %25 : vector<1x256xf32>
    %28 = vector.shape_cast %20 : vector<1x256xi32> to vector<1x1x256xi32>
    %29 = vector.shape_cast %21 : vector<1x256xi32> to vector<1x1x256xi32>
    %30 = vector.shape_cast %24 : vector<1x256xf32> to vector<1x1x256xf32>
    %31 = vector.shape_cast %22 : vector<1x256xf32> to vector<1x1x256xf32>
    %32 = vector.shape_cast %27 : vector<1x256xf32> to vector<1x1x256xf32>
    %33 = vector.shape_cast %25 : vector<1x256xf32> to vector<1x1x256xf32>
    %34 = tpu.iota {dimensions = array<i32: 0>} : vector<16x1x256xi32>
    %35 = tpu.iota {dimensions = array<i32: 1>} : vector<1x16x256xi32>
    %36 = vector.broadcast %29 : vector<1x1x256xi32> to vector<16x1x256xi32>
    %37 = arith.cmpi eq, %34, %36 : vector<16x1x256xi32>
    %cst_11 = arith.constant 0.000000e+00 : f32
    %38 = vector.shape_cast %32 : vector<1x1x256xf32> to vector<1x1x256xf32>
    %39 = vector.broadcast %38 : vector<1x1x256xf32> to vector<16x1x256xf32>
    %40 = vector.broadcast %cst_11 : f32 to vector<16x1x256xf32>
    %41 = arith.select %37, %39, %40 : vector<16x1x256xi1>, vector<16x1x256xf32>
    %c1_i32 = arith.constant 1 : i32
    %42 = vector.broadcast %c1_i32 : i32 to vector<1x1x256xi32>
    %43 = arith.addi %29, %42 : vector<1x1x256xi32>
    %44 = vector.broadcast %43 : vector<1x1x256xi32> to vector<16x1x256xi32>
    %45 = arith.cmpi eq, %34, %44 : vector<16x1x256xi32>
    %cst_12 = arith.constant 0.000000e+00 : f32
    %46 = vector.shape_cast %33 : vector<1x1x256xf32> to vector<1x1x256xf32>
    %47 = vector.broadcast %46 : vector<1x1x256xf32> to vector<16x1x256xf32>
    %48 = vector.broadcast %cst_12 : f32 to vector<16x1x256xf32>
    %49 = arith.select %45, %47, %48 : vector<16x1x256xi1>, vector<16x1x256xf32>
    %50 = arith.addf %41, %49 : vector<16x1x256xf32>
    %51 = vector.broadcast %28 : vector<1x1x256xi32> to vector<1x16x256xi32>
    %52 = arith.cmpi eq, %35, %51 : vector<1x16x256xi32>
    %cst_13 = arith.constant 0.000000e+00 : f32
    %53 = vector.shape_cast %30 : vector<1x1x256xf32> to vector<1x1x256xf32>
    %54 = vector.broadcast %53 : vector<1x1x256xf32> to vector<1x16x256xf32>
    %55 = vector.broadcast %cst_13 : f32 to vector<1x16x256xf32>
    %56 = arith.select %52, %54, %55 : vector<1x16x256xi1>, vector<1x16x256xf32>
    %c1_i32_14 = arith.constant 1 : i32
    %57 = vector.broadcast %c1_i32_14 : i32 to vector<1x1x256xi32>
    %58 = arith.addi %28, %57 : vector<1x1x256xi32>
    %59 = vector.broadcast %58 : vector<1x1x256xi32> to vector<1x16x256xi32>
    %60 = arith.cmpi eq, %35, %59 : vector<1x16x256xi32>
    %cst_15 = arith.constant 0.000000e+00 : f32
    %61 = vector.shape_cast %31 : vector<1x1x256xf32> to vector<1x1x256xf32>
    %62 = vector.broadcast %61 : vector<1x1x256xf32> to vector<1x16x256xf32>
    %63 = vector.broadcast %cst_15 : f32 to vector<1x16x256xf32>
    %64 = arith.select %60, %62, %63 : vector<1x16x256xi1>, vector<1x16x256xf32>
    %65 = arith.addf %56, %64 : vector<1x16x256xf32>
    %66 = vector.broadcast %50 : vector<16x1x256xf32> to vector<16x16x256xf32>
    %67 = vector.broadcast %65 : vector<1x16x256xf32> to vector<16x16x256xf32>
    %68 = arith.mulf %66, %67 : vector<16x16x256xf32>
    %69 = vector.shape_cast %68 : vector<16x16x256xf32> to vector<256x256xf32>
    %c0_16 = arith.constant 0 : index
    %c0_17 = arith.constant 0 : index
    %70 = vector.load %arg2[%c0_16, %c0_17] : memref<8x256xf32, #tpu.memory_space<vmem>>, vector<8x256xf32>
    %cst_18 = arith.constant dense<0.000000e+00> : vector<8x256xf32>
    %71 = tpu.matmul %70, %69, %cst_18 {dimension_numbers = #tpu.dot_dimension_numbers<[1], [0], [0], [1], [0, 0, 1, 1], [], []>} : vector<8x256xf32>, vector<256x256xf32>, vector<8x256xf32> -> vector<8x256xf32>
    %c0_19 = arith.constant 0 : index
    %c0_20 = arith.constant 0 : index
    %72 = vector.load %arg3[%c0_19, %c0_20] : memref<8x256xf32, #tpu.memory_space<vmem>>, vector<8x256xf32>
    tpu.vector_store %arg3[%c0_19, %c0_20], %71 {strides = array<i32>} : memref<8x256xf32, #tpu.memory_space<vmem>>, vector<8x256xf32>,
    return
  }
  func.func @transform_0(%arg0: i32) -> (i32, i32) {
    %c0_i32 = arith.constant 0 : i32
    %c0_i32_0 = arith.constant 0 : i32
    return %c0_i32, %arg0 : i32, i32
  }
  func.func @transform_1(%arg0: i32) -> (i32, i32) {
    %c0_i32 = arith.constant 0 : i32
    %c0_i32_0 = arith.constant 0 : i32
    %c0_i32_1 = arith.constant 0 : i32
    return %c0_i32, %c0_i32_0 : i32, i32
  }
  func.func @transform_2(%arg0: i32) -> (i32, i32) {
    %c0_i32 = arith.constant 0 : i32
    %c0_i32_0 = arith.constant 0 : i32
    return %c0_i32, %arg0 : i32, i32
  }
}

</mosaic_0001>

<llo_original>
// kernel: tpu_custom_call.1
$region0: #{tpu_custom_call.1}
  #allocation0 [shape = 'u32[]', space=smem, size = 0x4, offset = 0x4, fixed_abs, tag = 'smem constant byte address 0x4 - core index']
  #allocation1 [shape = 'u32[144,128]{1,0:T(1,128)}', space=vmem, size = 0x12000, scoped, tag = 'internal scratch']
  %s0 = inlined_call_operand.hbm [shape: f32[2,512], index: 0, kind: input, shape index: {}]
  %s1 = inlined_call_operand.hbm [shape: f32[8,256], index: 1, kind: input, shape index: {}]
  %s2 = inlined_call_operand.hbm [shape: f32[8,512], index: 2, kind: output, shape index: {}]
  %s3 = sld [smem:[#allocation0]]
  $region49: #{tpu_custom_call.1} parent=0
    _
  %s5 = ssub.s32 1, %s3
  %s6 = scalar_select 0, %s5, %s3
  $region1: #{tpu_custom_call.1} parent=0
    #allocation2 [shape = 'u8[4096]{0}', space=vmem, size = 0x1000, scoped, tag = 'input window, operand 0']
    #allocation3 [shape = 's32[2]{0}', space=sflag, size = 0x8, scoped, tag = 'scoped memory for tpu_custom_call.1']
    #allocation4 [shape = 's32[2]{0}', space=sflag, size = 0x8, scoped, tag = 'scoped memory for tpu_custom_call.1']
    #allocation5 [shape = 'u8[8192]{0}', space=vmem, size = 0x2000, scoped, tag = 'input window, operand 1, single buffered']
    #allocation6 [shape = 's32[1]{0}', space=sflag, size = 0x4, scoped, tag = 'scoped memory for tpu_custom_call.1']
    #allocation7 [shape = 'u8[16384]{0}', space=vmem, size = 0x4000, scoped, tag = 'output window, operand 0']
    %7 = vsyncpa [#allocation3], 0
    %s8 = scalar_lea.sflag [#allocation3], 1
    %9 = vsyncpa %s8, 0
    %10 = vsyncpa [#allocation6], 0
    %11 = vsyncpa [#allocation4], 0
    %s12 = scalar_lea.sflag [#allocation4], 1
    %13 = vsyncpa %s12, 0
    loop: start=0, step=1, limit=4
    $region2: #{tpu_custom_call.1} parent=1 // loop_pre_header
      _
    $region3: #{tpu_custom_call.1} parent=1 // loop_header
      %s15 = sphi 0, %s19
      %p16 = scmp.ge.s32.totalorder %s15, 4
      %s25 = sphi 0, %s27
      %s28 = sphi 0, %s25
      %s29 = sphi 0, %s28
      %s45 = sphi 0, %s29
      %s49 = sphi 0, %s49
      %s51 = sphi 0, %s49
      %s52 = sphi 0, %s51
      %s66 = sphi 0, %s52
      %s72 = sphi 0, %s74
      %s75 = sphi 0, %s72
      %s76 = sphi 0, %s75
      %s92 = sphi 0, %s76
    $region4: #{tpu_custom_call.1} parent=1 // loop_header_branch
      %18 = sbr.rel (%p16) target = $region8
    $region5: #{tpu_custom_call.1} parent=1 // loop_body
      %s20 = ssub.s32 %s15, 1
      %s21 = ssub.s32 %s15, 2
      %s22 = sadd.s32 %s15, 1
      %s23 = ssub.s32 %s15, %s22
      %p24 = scmp.eq.s32.totalorder %s23, 0
      %s26 = sadd.s32 %s25, 1
      %s27 = scalar_select %p24, %s25, %s26
      %p30 = pneg %p24
      %p31 = scmp.eq.s32.totalorder %s15, 1
      %p32 = por %p30, %p31
      %p33 = scmp.ne.s32.totalorder %s25, %s28
      %p34 = scmp.eq.s32.totalorder %s15, 0
      %p35 = por %p33, %p34
      %p36 = scmp.ne.s32.totalorder %s25, %s28
      %p37 = scmp.eq.s32.totalorder %s20, 1
      %p38 = por %p36, %p37
      %p39 = scmp.ne.s32.totalorder %s28, %s29
      %p40 = scmp.eq.s32.totalorder %s20, 0
      %p41 = por %p39, %p40
      %p42 = scmp.ne.s32.totalorder %s28, %s29
      %p43 = scmp.eq.s32.totalorder %s21, 1
      %p44 = por %p42, %p43
      %p46 = scmp.ne.s32.totalorder %s29, %s45
      %p47 = scmp.eq.s32.totalorder %s21, 0
      %p48 = por %p46, %p47
      %s50 = sadd.s32 %s49, 1
      %p53 = scmp.eq.s32.totalorder %s15, 1
      %p54 = scmp.ne.s32.totalorder %s49, %s51
      %p55 = scmp.eq.s32.totalorder %s15, 0
      %p56 = por %p54, %p55
      %p57 = scmp.ne.s32.totalorder %s49, %s51
      %p58 = scmp.eq.s32.totalorder %s20, 1
      %p59 = por %p57, %p58
      %p60 = scmp.ne.s32.totalorder %s51, %s52
      %p61 = scmp.eq.s32.totalorder %s20, 0
      %p62 = por %p60, %p61
      %p63 = scmp.ne.s32.totalorder %s51, %s52
      %p64 = scmp.eq.s32.totalorder %s21, 1
      %p65 = por %p63, %p64
      %p67 = scmp.ne.s32.totalorder %s52, %s66
      %p68 = scmp.eq.s32.totalorder %s21, 0
      %p69 = por %p67, %p68
      %s70 = ssub.s32 %s15, %s22
      %p71 = scmp.eq.s32.totalorder %s70, 0
      %s73 = sadd.s32 %s72, 1
      %s74 = scalar_select %p71, %s72, %s73
      %p77 = pneg %p71
      %p78 = scmp.eq.s32.totalorder %s15, 1
      %p79 = por %p77, %p78
      %p80 = scmp.ne.s32.totalorder %s72, %s75
      %p81 = scmp.eq.s32.totalorder %s15, 0
      %p82 = por %p80, %p81
      %p83 = scmp.ne.s32.totalorder %s72, %s75
      %p84 = scmp.eq.s32.totalorder %s20, 1
      %p85 = por %p83, %p84
      %p86 = scmp.ne.s32.totalorder %s75, %s76
      %p87 = scmp.eq.s32.totalorder %s20, 0
      %p88 = por %p86, %p87
      %p89 = scmp.ne.s32.totalorder %s75, %s76
      %p90 = scmp.eq.s32.totalorder %s21, 1
      %p91 = por %p89, %p90
      %p93 = scmp.ne.s32.totalorder %s76, %s92
      %p94 = scmp.eq.s32.totalorder %s21, 0
      %p95 = por %p93, %p94
      %p96 = scmp.le.s32.totalorder 1, %s15
      %p97 = scmp.lt.s32.totalorder %s15, 3
      %p98 = pnand %p96, %p97
      %p99 = pneg %p98
      // Predicated region
      $region9: #{tpu_custom_call.1} parent=5 // pred_check
        _
      $region10: #{tpu_custom_call.1} parent=5 // pred_check_branch
        %101 = sbr.rel (%p98) target = $region12
      $region11: #{tpu_custom_call.1} parent=5 // pred_region
        %s102 = ssub.s32 %s15, 1
        // Predicated region
        $region13: #{tpu_custom_call.1} parent=11 // pred_check
          %p103 = pneg %p62
        $region14: #{tpu_custom_call.1} parent=11 // pred_check_branch
          %105 = sbr.rel (%p103) target = $region16
        $region15: #{tpu_custom_call.1} parent=11 // pred_region
          %s107 = ssub.s32 256, 256
          %108 = vsyncadd [#allocation6], %s107
          %s110 = sshll.u32 [#allocation5], 4
          %s111 = int_to_ptr.vmem [resolvable:$true] %s110
          %113 = dma.hbm_to_vmem [thread:$0]  %s1, 256, %s111, [#allocation6]
        $region16: #{tpu_custom_call.1} parent=11 // pred_fallthru
          _
      $region12: #{tpu_custom_call.1} parent=5 // pred_fallthru
        _
      %p114 = scmp.lt.s32.totalorder %s15, 2
      // Predicated region
      $region17: #{tpu_custom_call.1} parent=5 // pred_check
        %p115 = pneg %p114
      $region18: #{tpu_custom_call.1} parent=5 // pred_check_branch
        %117 = sbr.rel (%p115) target = $region20
      $region19: #{tpu_custom_call.1} parent=5 // pred_region
        // Predicated region
        $region21: #{tpu_custom_call.1} parent=19 // pred_check
          %p118 = pneg %p35
        $region22: #{tpu_custom_call.1} parent=19 // pred_check_branch
          %120 = sbr.rel (%p118) target = $region24
        $region23: #{tpu_custom_call.1} parent=19 // pred_region
          %s121 = sand.u32 %s25, 1
          %s122 = scalar_lea.sflag [#allocation3], %s121
          %s123 = sand.u32 %s25, 1
          %s124 = smul.addr %s123, 4
          %s125 = scalar_lea.vmem [#allocation2], %s124
          %s126 = smul.u32 2, %s15
          %s128 = ssub.s32 64, 64
          %129 = vsyncadd %s122, %s128
          %s130 = smul.addr %s126, 32
          %s131 = scalar_lea.hbm %s0, %s130
          %s133 = sshll.u32 %s125, 4
          %s134 = int_to_ptr.vmem [resolvable:$true] %s133
          %136 = dma.hbm_to_vmem [thread:$0]  %s131, 64, %s134, %s122
        $region24: #{tpu_custom_call.1} parent=19 // pred_fallthru
          _
      $region20: #{tpu_custom_call.1} parent=5 // pred_fallthru
        _
      %p137 = scmp.le.s32.totalorder 1, %s15
      %p138 = scmp.lt.s32.totalorder %s15, 3
      %p139 = pnand %p137, %p138
      %p140 = pneg %p139
      // Predicated region
      $region25: #{tpu_custom_call.1} parent=5 // pred_check
        _
      $region26: #{tpu_custom_call.1} parent=5 // pred_check_branch
        %142 = sbr.rel (%p139) target = $region28
      $region27: #{tpu_custom_call.1} parent=5 // pred_region
        %s143 = ssub.s32 %s15, 1
        %s144 = sand.u32 %s28, 1
        %s145 = scalar_lea.sflag [#allocation3], %s144
        %s146 = sand.u32 %s28, 1
        %s147 = smul.addr %s146, 4
        %s148 = scalar_lea.vmem [#allocation2], %s147
        // Predicated region
        $region29: #{tpu_custom_call.1} parent=27 // pred_check
          %p149 = pneg %p41
        $region30: #{tpu_custom_call.1} parent=27 // pred_check_branch
          %151 = sbr.rel (%p149) target = $region32
        $region31: #{tpu_custom_call.1} parent=27 // pred_region
          %152 = dma.done %s145, 64
        $region32: #{tpu_custom_call.1} parent=27 // pred_fallthru
          _
        // Predicated region
        $region33: #{tpu_custom_call.1} parent=27 // pred_check
          %p153 = pneg %p62
        $region34: #{tpu_custom_call.1} parent=27 // pred_check_branch
          %155 = sbr.rel (%p153) target = $region36
        $region35: #{tpu_custom_call.1} parent=27 // pred_region
          %156 = dma.done [#allocation6], 256
        $region36: #{tpu_custom_call.1} parent=27 // pred_fallthru
          _
        %s157 = sand.u32 %s28, 1
        %s158 = scalar_lea.sflag [#allocation3], %s157
        %s159 = sand.u32 %s28, 1
        %s160 = smul.addr %s159, 4
        %s161 = scalar_lea.vmem [#allocation2], %s160
        %p162 = pneg %p41
        %p163 = pneg %p38
        %p164 = pneg %p62
        %p165 = pneg %p59
        %p166 = pneg %p88
        %p167 = pneg %p85
        %s168 = sand.u32 %s75, 1
        %s169 = scalar_lea.sflag [#allocation4], %s168
        %s170 = sand.u32 %s75, 1
        %s171 = smul.addr %s170, 16
        %s172 = scalar_lea.vmem [#allocation7], %s171
        %s173 = smul.u32 2, %s20
        %s174 = smul.u32 2, %s20
        %v175 = vld [vmem:[%s148] ss:$2 sm:$0x3]
        %s176 = scalar_lea.vmem %s148, 1 [#allocation2]
        %v177 = vld [vmem:[%s176] ss:$2 sm:$0x3]
        %v178 = vadd.f32 %v175, 1.0
        %v179 = vmul.f32 %v178, 16.0
        %v180 = vsub.f32 %v179, 1.0
        %v181 = vmul.f32 %v180, 0.5
        %v182 = vadd.f32 %v177, 1.0
        %v183 = vmul.f32 %v182, 16.0
        %v184 = vsub.f32 %v183, 1.0
        %v185 = vmul.f32 %v184, 0.5
        %v186 = vfloor.f32 %v181
        %v187 = vfloor.f32 %v185
        %v188 = vcvt.f32.s32.to.zero.pseudo %v186
        %v189 = vcvt.f32.s32.to.zero.pseudo %v187
        %v190 = vsub.f32 %v181, %v186
        %v191 = vsub.f32 1.0, %v190
        %v192 = vsub.f32 %v185, %v187
        %v193 = vsub.f32 1.0, %v192
        %v194 = vlaneseq
        %v195 = vshrl.u32 %v194, 7
        %v196 = vadd.s32 %v195, 8
        %vm197 = vcmp.eq.s32.totalorder %v189, 0
        %vm198 = vcmp.eq.s32.totalorder %v189, 1
        %vm199 = vcmp.eq.s32.totalorder %v189, 2
        %vm200 = vcmp.eq.s32.totalorder %v189, 3
        %vm201 = vcmp.eq.s32.totalorder %v189, 4
        %vm202 = vcmp.eq.s32.totalorder %v189, 5
        %vm203 = vcmp.eq.s32.totalorder %v189, 6
        %vm204 = vcmp.eq.s32.totalorder %v189, 7
        %vm205 = vcmp.eq.s32.totalorder %v189, 8
        %vm206 = vcmp.eq.s32.totalorder %v189, 9
        %vm207 = vcmp.eq.s32.totalorder %v189, 10
        %vm208 = vcmp.eq.s32.totalorder %v189, 11
        %vm209 = vcmp.eq.s32.totalorder %v189, 12
        %vm210 = vcmp.eq.s32.totalorder %v189, 13
        %vm211 = vcmp.eq.s32.totalorder %v189, 14
        %vm212 = vcmp.eq.s32.totalorder %v189, 15
        %v213 = vsel %vm197, %v193, 0.0
        %v214 = vsel %vm198, %v193, 0.0
        %v215 = vsel %vm199, %v193, 0.0
        %v216 = vsel %vm200, %v193, 0.0
        %v217 = vsel %vm201, %v193, 0.0
        %v218 = vsel %vm202, %v193, 0.0
        %v219 = vsel %vm203, %v193, 0.0
        %v220 = vsel %vm204, %v193, 0.0
        %v221 = vsel %vm205, %v193, 0.0
        %v222 = vsel %vm206, %v193, 0.0
        %v223 = vsel %vm207, %v193, 0.0
        %v224 = vsel %vm208, %v193, 0.0
        %v225 = vsel %vm209, %v193, 0.0
        %v226 = vsel %vm210, %v193, 0.0
        %v227 = vsel %vm211, %v193, 0.0
        %v228 = vsel %vm212, %v193, 0.0
        %v229 = vadd.s32 %v189, 1
        %vm230 = vcmp.eq.s32.totalorder %v229, 0
        %vm231 = vcmp.eq.s32.totalorder %v229, 1
        %vm232 = vcmp.eq.s32.totalorder %v229, 2
        %vm233 = vcmp.eq.s32.totalorder %v229, 3
        %vm234 = vcmp.eq.s32.totalorder %v229, 4
        %vm235 = vcmp.eq.s32.totalorder %v229, 5
        %vm236 = vcmp.eq.s32.totalorder %v229, 6
        %vm237 = vcmp.eq.s32.totalorder %v229, 7
        %vm238 = vcmp.eq.s32.totalorder %v229, 8
        %vm239 = vcmp.eq.s32.totalorder %v229, 9
        %vm240 = vcmp.eq.s32.totalorder %v229, 10
        %vm241 = vcmp.eq.s32.totalorder %v229, 11
        %vm242 = vcmp.eq.s32.totalorder %v229, 12
        %vm243 = vcmp.eq.s32.totalorder %v229, 13
        %vm244 = vcmp.eq.s32.totalorder %v229, 14
        %vm245 = vcmp.eq.s32.totalorder %v229, 15
        %v246 = vsel %vm230, %v192, 0.0
        %v247 = vsel %vm231, %v192, 0.0
        %v248 = vsel %vm232, %v192, 0.0
        %v249 = vsel %vm233, %v192, 0.0
        %v250 = vsel %vm234, %v192, 0.0
        %v251 = vsel %vm235, %v192, 0.0
        %v252 = vsel %vm236, %v192, 0.0
        %v253 = vsel %vm237, %v192, 0.0
        %v254 = vsel %vm238, %v192, 0.0
        %v255 = vsel %vm239, %v192, 0.0
        %v256 = vsel %vm240, %v192, 0.0
        %v257 = vsel %vm241, %v192, 0.0
        %v258 = vsel %vm242, %v192, 0.0
        %v259 = vsel %vm243, %v192, 0.0
        %v260 = vsel %vm244, %v192, 0.0
        %v261 = vsel %vm245, %v192, 0.0
        %v262 = vadd.f32 %v213, %v246
        %v263 = vadd.f32 %v214, %v247
        %v264 = vadd.f32 %v215, %v248
        %v265 = vadd.f32 %v216, %v249
        %v266 = vadd.f32 %v217, %v250
        %v267 = vadd.f32 %v218, %v251
        %v268 = vadd.f32 %v219, %v252
        %v269 = vadd.f32 %v220, %v253
        %v270 = vadd.f32 %v221, %v254
        %v271 = vadd.f32 %v222, %v255
        %v272 = vadd.f32 %v223, %v256
        %v273 = vadd.f32 %v224, %v257
        %v274 = vadd.f32 %v225, %v258
        %v275 = vadd.f32 %v226, %v259
        %v276 = vadd.f32 %v227, %v260
        %v277 = vadd.f32 %v228, %v261
        %v278 = vlaneseq
        %v279 = vshrl.u32 %v278, 7
        %v280 = vsub.s32 0, %v279
        %v281 = vrot.slane %v188, %v280
        %v282 = vlaneseq
        %v283 = vshrl.u32 %v282, 7
        %v284 = vsub.s32 1, %v283
        %v285 = vrot.slane %v188, %v284
        %vm286 = vcmp.eq.s32.totalorder %v195, %v281
        %vm287 = vcmp.eq.s32.totalorder %v195, %v285
        %vm288 = vcmp.eq.s32.totalorder %v196, %v281
        %vm289 = vcmp.eq.s32.totalorder %v196, %v285
        %v291 = vlaneseq
        %v292 = vshrl.u32 %v291, 7
        %v293 = vsub.s32 0, %v292
        %v294 = vrot.slane %v191, %v293
        %v295 = vlaneseq
        %v296 = vshrl.u32 %v295, 7
        %v297 = vsub.s32 1, %v296
        %v298 = vrot.slane %v191, %v297
        %v301 = vsel %vm286, %v294, 0.0
        %v302 = vsel %vm287, %v298, 0.0
        %v303 = vsel %vm288, %v294, 0.0
        %v304 = vsel %vm289, %v298, 0.0
        %v305 = vadd.s32 %v188, 1
        %v306 = vlaneseq
        %v307 = vshrl.u32 %v306, 7
        %v308 = vsub.s32 0, %v307
        %v309 = vrot.slane %v305, %v308
        %v310 = vlaneseq
        %v311 = vshrl.u32 %v310, 7
        %v312 = vsub.s32 1, %v311
        %v313 = vrot.slane %v305, %v312
        %vm314 = vcmp.eq.s32.totalorder %v195, %v309
        %vm315 = vcmp.eq.s32.totalorder %v195, %v313
        %vm316 = vcmp.eq.s32.totalorder %v196, %v309
        %vm317 = vcmp.eq.s32.totalorder %v196, %v313
        %v319 = vlaneseq
        %v320 = vshrl.u32 %v319, 7
        %v321 = vsub.s32 0, %v320
        %v322 = vrot.slane %v190, %v321
        %v323 = vlaneseq
        %v324 = vshrl.u32 %v323, 7
        %v325 = vsub.s32 1, %v324
        %v326 = vrot.slane %v190, %v325
        %v329 = vsel %vm314, %v322, 0.0
        %v330 = vsel %vm315, %v326, 0.0
        %v331 = vsel %vm316, %v322, 0.0
        %v332 = vsel %vm317, %v326, 0.0
        %v333 = vadd.f32 %v301, %v329
        %v334 = vadd.f32 %v302, %v330
        %v335 = vadd.f32 %v303, %v331
        %v336 = vadd.f32 %v304, %v332
        %v353 = vlaneseq
        %v354 = vshrl.u32 %v353, 7
        %v355 = vsub.s32 0, %v354
        %v356 = vrot.slane %v262, %v355
        %v357 = vlaneseq
        %v358 = vshrl.u32 %v357, 7
        %v359 = vsub.s32 1, %v358
        %v360 = vrot.slane %v262, %v359
        %v361 = vlaneseq
        %v362 = vshrl.u32 %v361, 7
        %v363 = vsub.s32 0, %v362
        %v364 = vrot.slane %v263, %v363
        %v365 = vlaneseq
        %v366 = vshrl.u32 %v365, 7
        %v367 = vsub.s32 1, %v366
        %v368 = vrot.slane %v263, %v367
        %v369 = vlaneseq
        %v370 = vshrl.u32 %v369, 7
        %v371 = vsub.s32 0, %v370
        %v372 = vrot.slane %v264, %v371
        %v373 = vlaneseq
        %v374 = vshrl.u32 %v373, 7
        %v375 = vsub.s32 1, %v374
        %v376 = vrot.slane %v264, %v375
        %v377 = vlaneseq
        %v378 = vshrl.u32 %v377, 7
        %v379 = vsub.s32 0, %v378
        %v380 = vrot.slane %v265, %v379
        %v381 = vlaneseq
        %v382 = vshrl.u32 %v381, 7
        %v383 = vsub.s32 1, %v382
        %v384 = vrot.slane %v265, %v383
        %v385 = vlaneseq
        %v386 = vshrl.u32 %v385, 7
        %v387 = vsub.s32 0, %v386
        %v388 = vrot.slane %v266, %v387
        %v389 = vlaneseq
        %v390 = vshrl.u32 %v389, 7
        %v391 = vsub.s32 1, %v390
        %v392 = vrot.slane %v266, %v391
        %v393 = vlaneseq
        %v394 = vshrl.u32 %v393, 7
        %v395 = vsub.s32 0, %v394
        %v396 = vrot.slane %v267, %v395
        %v397 = vlaneseq
        %v398 = vshrl.u32 %v397, 7
        %v399 = vsub.s32 1, %v398
        %v400 = vrot.slane %v267, %v399
        %v401 = vlaneseq
        %v402 = vshrl.u32 %v401, 7
        %v403 = vsub.s32 0, %v402
        %v404 = vrot.slane %v268, %v403
        %v405 = vlaneseq
        %v406 = vshrl.u32 %v405, 7
        %v407 = vsub.s32 1, %v406
        %v408 = vrot.slane %v268, %v407
        %v409 = vlaneseq
        %v410 = vshrl.u32 %v409, 7
        %v411 = vsub.s32 0, %v410
        %v412 = vrot.slane %v269, %v411
        %v413 = vlaneseq
        %v414 = vshrl.u32 %v413, 7
        %v415 = vsub.s32 1, %v414
        %v416 = vrot.slane %v269, %v415
        %v417 = vlaneseq
        %v418 = vshrl.u32 %v417, 7
        %v419 = vsub.s32 0, %v418
        %v420 = vrot.slane %v270, %v419
        %v421 = vlaneseq
        %v422 = vshrl.u32 %v421, 7
        %v423 = vsub.s32 1, %v422
        %v424 = vrot.slane %v270, %v423
        %v425 = vlaneseq
        %v426 = vshrl.u32 %v425, 7
        %v427 = vsub.s32 0, %v426
        %v428 = vrot.slane %v271, %v427
        %v429 = vlaneseq
        %v430 = vshrl.u32 %v429, 7
        %v431 = vsub.s32 1, %v430
        %v432 = vrot.slane %v271, %v431
        %v433 = vlaneseq
        %v434 = vshrl.u32 %v433, 7
        %v435 = vsub.s32 0, %v434
        %v436 = vrot.slane %v272, %v435
        %v437 = vlaneseq
        %v438 = vshrl.u32 %v437, 7
        %v439 = vsub.s32 1, %v438
        %v440 = vrot.slane %v272, %v439
        %v441 = vlaneseq
        %v442 = vshrl.u32 %v441, 7
        %v443 = vsub.s32 0, %v442
        %v444 = vrot.slane %v273, %v443
        %v445 = vlaneseq
        %v446 = vshrl.u32 %v445, 7
        %v447 = vsub.s32 1, %v446
        %v448 = vrot.slane %v273, %v447
        %v449 = vlaneseq
        %v450 = vshrl.u32 %v449, 7
        %v451 = vsub.s32 0, %v450
        %v452 = vrot.slane %v274, %v451
        %v453 = vlaneseq
        %v454 = vshrl.u32 %v453, 7
        %v455 = vsub.s32 1, %v454
        %v456 = vrot.slane %v274, %v455
        %v457 = vlaneseq
        %v458 = vshrl.u32 %v457, 7
        %v459 = vsub.s32 0, %v458
        %v460 = vrot.slane %v275, %v459
        %v461 = vlaneseq
        %v462 = vshrl.u32 %v461, 7
        %v463 = vsub.s32 1, %v462
        %v464 = vrot.slane %v275, %v463
        %v465 = vlaneseq
        %v466 = vshrl.u32 %v465, 7
        %v467 = vsub.s32 0, %v466
        %v468 = vrot.slane %v276, %v467
        %v469 = vlaneseq
        %v470 = vshrl.u32 %v469, 7
        %v471 = vsub.s32 1, %v470
        %v472 = vrot.slane %v276, %v471
        %v473 = vlaneseq
        %v474 = vshrl.u32 %v473, 7
        %v475 = vsub.s32 0, %v474
        %v476 = vrot.slane %v277, %v475
        %v477 = vlaneseq
        %v478 = vshrl.u32 %v477, 7
        %v479 = vsub.s32 1, %v478
        %v480 = vrot.slane %v277, %v479
        %v513 = vmul.f32 %v356, %v333
        %v514 = vmul.f32 %v360, %v334
        %v515 = vmul.f32 %v356, %v335
        %v516 = vmul.f32 %v360, %v336
        %v517 = vmul.f32 %v364, %v333
        %v518 = vmul.f32 %v368, %v334
        %v519 = vmul.f32 %v364, %v335
        %v520 = vmul.f32 %v368, %v336
        %v521 = vmul.f32 %v372, %v333
        %v522 = vmul.f32 %v376, %v334
        %v523 = vmul.f32 %v372, %v335
        %v524 = vmul.f32 %v376, %v336
        %v525 = vmul.f32 %v380, %v333
        %v526 = vmul.f32 %v384, %v334
        %v527 = vmul.f32 %v380, %v335
        %v528 = vmul.f32 %v384, %v336
        %v529 = vmul.f32 %v388, %v333
        %v530 = vmul.f32 %v392, %v334
        %v531 = vmul.f32 %v388, %v335
        %v532 = vmul.f32 %v392, %v336
        %v533 = vmul.f32 %v396, %v333
        %v534 = vmul.f32 %v400, %v334
        %v535 = vmul.f32 %v396, %v335
        %v536 = vmul.f32 %v400, %v336
        %v537 = vmul.f32 %v404, %v333
        %v538 = vmul.f32 %v408, %v334
        %v539 = vmul.f32 %v404, %v335
        %v540 = vmul.f32 %v408, %v336
        %v541 = vmul.f32 %v412, %v333
        %v542 = vmul.f32 %v416, %v334
        %v543 = vmul.f32 %v412, %v335
        %v544 = vmul.f32 %v416, %v336
        %v545 = vmul.f32 %v420, %v333
        %v546 = vmul.f32 %v424, %v334
        %v547 = vmul.f32 %v420, %v335
        %v548 = vmul.f32 %v424, %v336
        %v549 = vmul.f32 %v428, %v333
        %v550 = vmul.f32 %v432, %v334
        %v551 = vmul.f32 %v428, %v335
        %v552 = vmul.f32 %v432, %v336
        %v553 = vmul.f32 %v436, %v333
        %v554 = vmul.f32 %v440, %v334
        %v555 = vmul.f32 %v436, %v335
        %v556 = vmul.f32 %v440, %v336
        %v557 = vmul.f32 %v444, %v333
        %v558 = vmul.f32 %v448, %v334
        %v559 = vmul.f32 %v444, %v335
        %v560 = vmul.f32 %v448, %v336
        %v561 = vmul.f32 %v452, %v333
        %v562 = vmul.f32 %v456, %v334
        %v563 = vmul.f32 %v452, %v335
        %v564 = vmul.f32 %v456, %v336
        %v565 = vmul.f32 %v460, %v333
        %v566 = vmul.f32 %v464, %v334
        %v567 = vmul.f32 %v460, %v335
        %v568 = vmul.f32 %v464, %v336
        %v569 = vmul.f32 %v468, %v333
        %v570 = vmul.f32 %v472, %v334
        %v571 = vmul.f32 %v468, %v335
        %v572 = vmul.f32 %v472, %v336
        %v573 = vmul.f32 %v476, %v333
        %v574 = vmul.f32 %v480, %v334
        %v575 = vmul.f32 %v476, %v335
        %v576 = vmul.f32 %v480, %v336
        %v577 = vld [vmem:[#allocation5] sm:$0xff]
        %v578 = vld [vmem:[#allocation5 + $0x8] sm:$0xff]
        %579 = vmatprep.subr.mxu0 %v514
        %580 = vmatpush1.msra.mxu0 %v513
        %581 = vmatprep.subr.mxu0 %v516
        %582 = vmatpush1.msra.mxu0 %v515
        %583 = vmatprep.subr.mxu0 %v518
        %584 = vmatpush1.msra.mxu0 %v517
        %585 = vmatprep.subr.mxu0 %v520
        %586 = vmatpush1.msra.mxu0 %v519
        %587 = vmatprep.subr.mxu0 %v522
        %588 = vmatpush1.msra.mxu0 %v521
        %589 = vmatprep.subr.mxu0 %v524
        %590 = vmatpush1.msra.mxu0 %v523
        %591 = vmatprep.subr.mxu0 %v526
        %592 = vmatpush1.msra.mxu0 %v525
        %593 = vmatprep.subr.mxu0 %v528
        %594 = vmatpush1.msra.mxu0 %v527
        %595 = vmatprep.subr.mxu0 %v530
        %596 = vmatpush1.msra.mxu0 %v529
        %597 = vmatprep.subr.mxu0 %v532
        %598 = vmatpush1.msra.mxu0 %v531
        %599 = vmatprep.subr.mxu0 %v534
        %600 = vmatpush1.msra.mxu0 %v533
        %601 = vmatprep.subr.mxu0 %v536
        %602 = vmatpush1.msra.mxu0 %v535
        %603 = vmatprep.subr.mxu0 %v538
        %604 = vmatpush1.msra.mxu0 %v537
        %605 = vmatprep.subr.mxu0 %v540
        %606 = vmatpush1.msra.mxu0 %v539
        %607 = vmatprep.subr.mxu0 %v542
        %608 = vmatpush1.msra.mxu0 %v541
        %609 = vmatprep.subr.mxu0 %v544
        %610 = vmatpush1.msra.mxu0 %v543
        %611 = vmatprep.subr.mxu0 %v546
        %612 = vmatpush1.msra.mxu0 %v545
        %613 = vmatprep.subr.mxu0 %v548
        %614 = vmatpush1.msra.mxu0 %v547
        %615 = vmatprep.subr.mxu0 %v550
        %616 = vmatpush1.msra.mxu0 %v549
        %617 = vmatprep.subr.mxu0 %v552
        %618 = vmatpush1.msra.mxu0 %v551
        %619 = vmatprep.subr.mxu0 %v554
        %620 = vmatpush1.msra.mxu0 %v553
        %621 = vmatprep.subr.mxu0 %v556
        %622 = vmatpush1.msra.mxu0 %v555
        %623 = vmatprep.subr.mxu0 %v558
        %624 = vmatpush1.msra.mxu0 %v557
        %625 = vmatprep.subr.mxu0 %v560
        %626 = vmatpush1.msra.mxu0 %v559
        %627 = vmatprep.subr.mxu0 %v562
        %628 = vmatpush1.msra.mxu0 %v561
        %629 = vmatprep.subr.mxu0 %v564
        %630 = vmatpush1.msra.mxu0 %v563
        %631 = vmatprep.subr.mxu0 %v566
        %632 = vmatpush1.msra.mxu0 %v565
        %633 = vmatprep.subr.mxu0 %v568
        %634 = vmatpush1.msra.mxu0 %v567
        %635 = vmatprep.subr.mxu0 %v570
        %636 = vmatpush1.msra.mxu0 %v569
        %637 = vmatprep.subr.mxu0 %v572
        %638 = vmatpush1.msra.mxu0 %v571
        %639 = vmatprep.subr.mxu0 %v574
        %640 = vmatpush1.msra.mxu0 %v573
        %641 = vmatprep.subr.mxu0 %v576
        %642 = vmatpush1.msra.mxu0 %v575
        %643 = vmatprep.mubr.f32.mxu0 %v578
        %644 = vmatmul.mubr.f32.gmra.mrb[0].mxu0 %v577
        %v645 = vpop.f32.mrb[0].mxu0
        %v646 = vadd.f32 0.0, %v645
        %v647 = vpop.f32.mrb[0].mxu0
        %v648 = vadd.f32 0.0, %v647
        %649 = vdwg.mxu0
        %650 = vst [vmem:[%s172] sm:$0xff] %v646
        %651 = vst [vmem:[%s172 + $0x8] sm:$0xff] %v648
        %s652 = sand.u32 %s75, 1
        %s653 = scalar_lea.sflag [#allocation4], %s652
        %s654 = sand.u32 %s75, 1
        %s655 = smul.addr %s654, 16
        %s656 = scalar_lea.vmem [#allocation7], %s655
        // Predicated region
        $region37: #{tpu_custom_call.1} parent=27 // pred_check
          %p657 = pneg %p85
        $region38: #{tpu_custom_call.1} parent=27 // pred_check_branch
          %659 = sbr.rel (%p657) target = $region40
        $region39: #{tpu_custom_call.1} parent=27 // pred_region
          %s660 = smul.u32 2, %s20
          %s662 = ssub.s32 256, 256
          %663 = vsyncadd %s653, %s662
          %s664 = smul.addr %s660, 128
          %s665 = scalar_lea.hbm %s2, %s664
          %s667 = sshll.u32 %s656, 4
          %s668 = int_to_ptr.vmem [resolvable:$true] %s667
          %670 = dma.vmem_to_hbm [thread:$0]  %s668, 256, %s665, %s653
        $region40: #{tpu_custom_call.1} parent=27 // pred_fallthru
          _
      $region28: #{tpu_custom_call.1} parent=5 // pred_fallthru
        _
      %p671 = scmp.le.s32.totalorder 2, %s15
      // Predicated region
      $region41: #{tpu_custom_call.1} parent=5 // pred_check
        %p672 = pneg %p671
      $region42: #{tpu_custom_call.1} parent=5 // pred_check_branch
        %674 = sbr.rel (%p672) target = $region44
      $region43: #{tpu_custom_call.1} parent=5 // pred_region
        %s675 = ssub.s32 %s15, 2
        // Predicated region
        $region45: #{tpu_custom_call.1} parent=43 // pred_check
          %p676 = pneg %p91
        $region46: #{tpu_custom_call.1} parent=43 // pred_check_branch
          %678 = sbr.rel (%p676) target = $region48
        $region47: #{tpu_custom_call.1} parent=43 // pred_region
          %s679 = sand.u32 %s76, 1
          %s680 = scalar_lea.sflag [#allocation4], %s679
          %s681 = sand.u32 %s76, 1
          %s682 = smul.addr %s681, 16
          %s683 = scalar_lea.vmem [#allocation7], %s682
          %684 = dma.done %s680, 256
        $region48: #{tpu_custom_call.1} parent=43 // pred_fallthru
          _
      $region44: #{tpu_custom_call.1} parent=5 // pred_fallthru
        _
    $region6: #{tpu_custom_call.1} parent=1 // loop_footer
      %s19 = sadd.s32 1, %s15
    $region7: #{tpu_custom_call.1} parent=1 // loop_footer_branch
      %14 = sbr.rel target = $region3
    $region8: #{tpu_custom_call.1} parent=1 // loop_exit
      _
    %685 = vsyncpa [#allocation3], 1
    %s686 = scalar_lea.sflag [#allocation3], 1
    %687 = vsyncpa %s686, 1
    %688 = vsyncpa [#allocation6], 1
    %689 = vsyncpa [#allocation4], 1
    %s690 = scalar_lea.sflag [#allocation4], 1
    %691 = vsyncpa %s690, 1

</llo_original>
